<compile_context>
chip_gen: v7x
topology: tpu7x:2x2x1
jax: 0.10.0
libtpu: 0.0.40
codegen_flags: <defaults>
</compile_context>

<pallas_src>
import jax
import jax.numpy as jnp
import numpy as np
from jax import lax
from jax.experimental import pallas as pl
from jax.experimental.pallas import tpu as pltpu

EPS = 1e-5   # nn.BatchNorm2d default eps
K = 3        # FReLU defaults: kernel_size=3, stride=1, padding=1


# --------------------------------------------------------------------------- #
# In-kernel helpers
# --------------------------------------------------------------------------- #
def _conv3x3(x, w_ref, m_ref, W, HW):
    """Depthwise 3x3 conv (stride 1, pad 1) on a (B, cb, H*W) f32 slab.

    Row-column decomposition: the two column-shifted copies (lane rolls by +-1)
    are built and w-masked ONCE, combined into the three per-row inner sums
    with per-channel taps (VPU), and only the +-1-row inner sums are rolled by
    +-W and h-masked.  Total: 4 XLU rolls + 4 mask multiplies (the naive 9-tap
    form needs 8 + 8).

    The masks are a precomputed (4, 1, H*W) lane table (VMEM-resident): they
    zero lanes where a rolled copy wrapped across a row/image boundary.
    Conv bias is omitted: it cancels exactly under training-mode BatchNorm.
    """
    masks = m_ref[...]                                    # (4, 1, HW) f32
    mw_m, mw_p = masks[0:1], masks[1:2]                   # w-1 / w+1 in bounds
    mh_m, mh_p = masks[2:3], masks[3:4]                   # h-1 / h+1 in bounds

    # Column (lane) shifts, masked once, reused by all three rows.
    x_l = pltpu.roll(x, shift=1 % HW, axis=2) * mw_m           # x[h, w-1]
    x_r = pltpu.roll(x, shift=(HW - 1) % HW, axis=2) * mw_p    # x[h, w+1]

    def tap(t):
        return w_ref[t][None]                             # (1, cb, 1) f32

    def row(di):                                          # inner sum over dj
        base = (di + 1) * K
        return tap(base) * x_l + tap(base + 1) * x + tap(base + 2) * x_r

    acc = row(0)
    acc = acc + pltpu.roll(row(-1), shift=W % HW, axis=2) * mh_m        # row h-1
    acc = acc + pltpu.roll(row(1), shift=(HW - W) % HW, axis=2) * mh_p  # row h+1
    return acc


def _batch_stats(acc):
    """Per-channel sum / sum-of-squares of a (B, cb, H*W) f32 slab -> (1, cb, 1)."""
    # TODO(synk): offload these lane reductions to the idle MXU (dot with a ones
    # column) once cb % 8 == 0 is guaranteed; kept as reduces here so the
    # cb == C < 8 case stays layout/lowering-safe.
    s1 = jnp.sum(jnp.sum(acc, axis=2, keepdims=True), axis=0, keepdims=True)
    s2 = jnp.sum(jnp.sum(acc * acc, axis=2, keepdims=True), axis=0, keepdims=True)
    return s1, s2


# --------------------------------------------------------------------------- #
# Kernels
# --------------------------------------------------------------------------- #
def _make_fused_kernel(H, W):
    """Single-pass kernel: batch-resident per channel block (x read once)."""
    HW = H * W

    def kernel(x_ref, w_ref, m_ref, g_ref, b_ref, o_ref):
        n = x_ref.shape[0]
        x = x_ref[...].astype(jnp.float32)                # (N, cb, HW)
        acc = _conv3x3(x, w_ref, m_ref, W, HW)

        # BatchNorm2d, training mode: batch stats over (N, H*W), biased var.
        # NOTE: var = E[x^2] - mean^2 in one fused f32 pass; documented
        # cancellation risk if the post-conv mean ever dwarfs the std.
        s1, s2 = _batch_stats(acc)
        inv_cnt = 1.0 / float(n * HW)
        mean = s1 * inv_cnt
        var = jnp.maximum(s2 * inv_cnt - mean * mean, 0.0)
        scale = g_ref[...][None] * lax.rsqrt(var + EPS)   # (1, cb, 1)
        offset = b_ref[...][None] - mean * scale
        tx = acc * scale + offset

        # FReLU funnel max; re-read x so the f32 input copy is not kept live
        # across the whole conv (shorter largest live range on big blocks).
        o_ref[...] = jnp.maximum(x_ref[...].astype(jnp.float32),
                                 tx).astype(o_ref.dtype)

    return kernel


def _make_stats_kernel(H, W):
    """Two-phase BN, pass 1: accumulate per-channel s1/s2 over N tiles."""
    HW = H * W

    def kernel(x_ref, w_ref, m_ref, s1_ref, s2_ref):
        @pl.when(pl.program_id(1) == 0)
        def _():
            s1_ref[...] = jnp.zeros_like(s1_ref)
            s2_ref[...] = jnp.zeros_like(s2_ref)

        x = x_ref[...].astype(jnp.float32)                # (nb, cb, HW)
        acc = _conv3x3(x, w_ref, m_ref, W, HW)
        s1, s2 = _batch_stats(acc)
        s1_ref[...] += s1
        s2_ref[...] += s2

    return kernel


def _make_apply_kernel(H, W):
    """Two-phase BN, pass 2: recompute the cheap conv, scale/offset, max."""
    HW = H * W

    def kernel(x_ref, w_ref, m_ref, sc_ref, of_ref, o_ref):
        x = x_ref[...].astype(jnp.float32)                # (nb, cb, HW)
        acc = _conv3x3(x, w_ref, m_ref, W, HW)
        tx = acc * sc_ref[...][None] + of_ref[...][None]
        o_ref[...] = jnp.maximum(x_ref[...].astype(jnp.float32),
                                 tx).astype(o_ref.dtype)

    return kernel


# --------------------------------------------------------------------------- #
# Host wrapper
# --------------------------------------------------------------------------- #
def _default_vmem_limit_bytes():
    try:
        cap = int(pltpu.get_tpu_info().vmem_capacity_bytes)
    except Exception:
        cap = 64 * 1024 * 1024            # conservative (v7x-sized) fallback
    # Well above the 16/32 MiB default scoped limits, with headroom below the
    # physical capacity (64 MiB on v7x, 128 MiB on v5e/v6e).
    return min((cap * 3) // 4, 96 * 1024 * 1024)


def frelu(x, w, b, gamma, beta, *, channels_per_block=None, batch_per_block=None,
          two_pass=None, vmem_limit_bytes=None):
    """FReLU forward: max(x, BN(depthwise_conv3x3(x))), training-mode BN.

    x: (N, C, H, W); w: (C, 3, 3) depthwise filter; b: (C,) conv bias (unused:
    cancels exactly under training-mode BN); gamma, beta: (C,) BN affine.
    I/O may be f32 or bf16; compute and BN statistics are f32 in-kernel.
    """
    # TODO(synk): eval-mode BatchNorm (running_mean/var + momentum update) is not
    # implemented; only training-mode batch statistics are used, which is also
    # what makes dropping the conv bias exact.
    del b
    N, C, H, W = x.shape
    HW = H * W
    itemsize = jnp.dtype(x.dtype).itemsize

    if vmem_limit_bytes is None:
        vmem_limit_bytes = _default_vmem_limit_bytes()
    vmem_limit_bytes = int(vmem_limit_bytes)
    budget = vmem_limit_bytes

    # Rough per-grid-step VMEM footprint: double-buffered in + out blocks plus
    # ~5 slab-sized f32 temporaries inside the kernel (x, x_l/x_r, rows, acc).
    def footprint(nb_, cb_):
        return 4 * nb_ * cb_ * HW * itemsize + 5 * nb_ * cb_ * HW * 4

    # ---- channel block: largest multiple-of-8 divisor of C (or C itself) that
    # fits the budget -> (8,128)-legal blocks, no whole-tensor fallback. ----
    legal_cb = sorted([d for d in range(8, C, 8) if C % d == 0] + [C])
    if channels_per_block is None:
        fit_full = [d for d in legal_cb if footprint(N, d) <= budget]
        if fit_full:
            cb = fit_full[-1]
        else:
            fit_one = [d for d in legal_cb if footprint(1, d) <= budget]
            cb = fit_one[-1] if fit_one else legal_cb[0]
    else:
        cb = channels_per_block
    assert C % cb == 0 and (cb % 8 == 0 or cb == C), (
        f"channels_per_block={cb} must divide C={C} and be a multiple of 8 "
        f"(or equal C) for a legal (8,128) BlockSpec")

    # ---- fused (batch-resident) vs N-tiled two-phase BN ----
    if two_pass is None:
        two_pass = footprint(N, cb) > budget

    if two_pass:
        if batch_per_block is None:
            fit_n = [d for d in range(1, N + 1)
                     if N % d == 0 and footprint(d, cb) <= budget]
            nb = max(fit_n) if fit_n else 1
            # TODO(synk): if even nb == 1 does not fit, add an H-row-group grid
            # axis (the two-phase stats structure already supports it).
        else:
            nb = batch_per_block
        assert N % nb == 0
    else:
        nb = N

    # ---- lane-dense layout + small resident tables ----
    # TODO(synk): H*W not a multiple of 128 (56x56, 28x28, ...) still works but
    # stores become masked partial vst; pad HW to a 128 multiple (excluding the
    # pad from the BN count) or use an (N, cb, H, W) block for those layers.
    x_flat = x.reshape(N, C, HW)
    w9 = jnp.transpose(w.reshape(C, K * K), (1, 0)).reshape(K * K, C, 1)
    w9 = w9.astype(jnp.float32)
    hh = jnp.arange(HW, dtype=jnp.int32) // W
    ww = jnp.arange(HW, dtype=jnp.int32) % W
    masks = jnp.stack([ww >= 1, ww <= W - 2, hh >= 1, hh <= H - 2]
                      ).astype(jnp.float32).reshape(4, 1, HW)
    g2 = gamma.reshape(C, 1).astype(jnp.float32)
    be2 = beta.reshape(C, 1).astype(jnp.float32)

    if not two_pass:
        out = pl.pallas_call(
            _make_fused_kernel(H, W),
            out_shape=jax.ShapeDtypeStruct((N, C, HW), x.dtype),
            grid_spec=pltpu.PrefetchScalarGridSpec(
                num_scalar_prefetch=0,
                grid=(C // cb,),
                in_specs=[
                    pl.BlockSpec((N, cb, HW), lambda c: (0, c, 0)),      # x
                    pl.BlockSpec((K * K, cb, 1), lambda c: (0, c, 0)),   # taps
                    pl.BlockSpec((4, 1, HW), lambda c: (0, 0, 0)),       # masks
                    pl.BlockSpec((cb, 1), lambda c: (c, 0)),             # gamma
                    pl.BlockSpec((cb, 1), lambda c: (c, 0)),             # beta
                ],
                out_specs=pl.BlockSpec((N, cb, HW), lambda c: (0, c, 0)),
            ),
            compiler_params=pltpu.CompilerParams(
                dimension_semantics=("parallel",),
                vmem_limit_bytes=vmem_limit_bytes),
        )(x_flat, w9, masks, g2, be2)
        return out.reshape(N, C, H, W)

    # ---- pass 1: per-channel s1/s2 accumulated over the (arbitrary) N axis ----
    s1, s2 = pl.pallas_call(
        _make_stats_kernel(H, W),
        out_shape=(jax.ShapeDtypeStruct((1, C, 1), jnp.float32),
                   jax.ShapeDtypeStruct((1, C, 1), jnp.float32)),
        grid_spec=pltpu.PrefetchScalarGridSpec(
            num_scalar_prefetch=0,
            grid=(C // cb, N // nb),                      # reduction axis last
            in_specs=[
                pl.BlockSpec((nb, cb, HW), lambda c, n: (n, c, 0)),
                pl.BlockSpec((K * K, cb, 1), lambda c, n: (0, c, 0)),
                pl.BlockSpec((4, 1, HW), lambda c, n: (0, 0, 0)),
            ],
            out_specs=(pl.BlockSpec((1, cb, 1), lambda c, n: (0, c, 0)),
                       pl.BlockSpec((1, cb, 1), lambda c, n: (0, c, 0))),
        ),
        compiler_params=pltpu.CompilerParams(
            dimension_semantics=("parallel", "arbitrary"),
            vmem_limit_bytes=vmem_limit_bytes),
    )(x_flat, w9, masks)

    # Fold BN into one per-channel scale/offset on the host (tiny arrays).
    inv_cnt = 1.0 / float(N * HW)
    mean = s1 * inv_cnt
    var = jnp.maximum(s2 * inv_cnt - mean * mean, 0.0)
    scale = gamma.astype(jnp.float32).reshape(1, C, 1) * lax.rsqrt(var + EPS)
    offset = beta.astype(jnp.float32).reshape(1, C, 1) - mean * scale
    scale = scale.reshape(C, 1)
    offset = offset.reshape(C, 1)

    # ---- pass 2: recompute the cheap conv, apply scale/offset, max with x ----
    out = pl.pallas_call(
        _make_apply_kernel(H, W),
        out_shape=jax.ShapeDtypeStruct((N, C, HW), x.dtype),
        grid_spec=pltpu.PrefetchScalarGridSpec(
            num_scalar_prefetch=0,
            grid=(C // cb, N // nb),
            in_specs=[
                pl.BlockSpec((nb, cb, HW), lambda c, n: (n, c, 0)),
                pl.BlockSpec((K * K, cb, 1), lambda c, n: (0, c, 0)),
                pl.BlockSpec((4, 1, HW), lambda c, n: (0, 0, 0)),
                pl.BlockSpec((cb, 1), lambda c, n: (c, 0)),              # scale
                pl.BlockSpec((cb, 1), lambda c, n: (c, 0)),              # offset
            ],
            out_specs=pl.BlockSpec((nb, cb, HW), lambda c, n: (n, c, 0)),
        ),
        compiler_params=pltpu.CompilerParams(
            dimension_semantics=("parallel", "parallel"),
            vmem_limit_bytes=vmem_limit_bytes),
    )(x_flat, w9, masks, scale, offset)
    return out.reshape(N, C, H, W)


# --------------------------------------------------------------------------- #
# Pure-JAX reference (depthwise conv + bias + training-mode BN + max)
# --------------------------------------------------------------------------- #
def frelu_reference(x, w, b, gamma, beta):
    N, C, H, W = x.shape
    tx = lax.conv_general_dilated(
        x, w.reshape(C, 1, K, K),
        window_strides=(1, 1), padding=((1, 1), (1, 1)),
        dimension_numbers=("NCHW", "OIHW", "NCHW"),
        feature_group_count=C,
    ) + b.reshape(1, C, 1, 1)
    mean = jnp.mean(tx, axis=(0, 2, 3), keepdims=True)
    var = jnp.mean((tx - mean) ** 2, axis=(0, 2, 3), keepdims=True)
    tx = (tx - mean) * lax.rsqrt(var + EPS) * gamma.reshape(1, C, 1, 1) \
         + beta.reshape(1, C, 1, 1)
    return jnp.maximum(x, tx)


if __name__ == "__main__":
    def make_params(C, k1, k2, k3, k4):
        fan_in = K * K
        bound = 1.0 / np.sqrt(fan_in)
        conv_w = jax.random.uniform(k1, (C, K, K), jnp.float32, -bound, bound)
        conv_b = jax.random.uniform(k2, (C,), jnp.float32, -bound, bound)
        gamma = 1.0 + 0.1 * jax.random.normal(k3, (C,), jnp.float32)
        beta = 0.1 * jax.random.normal(k4, (C,), jnp.float32)
        return conv_w, conv_b, gamma, beta

    # --- Test 1: small shape, fused single-pass path, f32 I/O ---
    k = jax.random.split(jax.random.PRNGKey(0), 5)
    N, C, H, W = 2, 4, 16, 16
    x = jax.random.normal(k[0], (N, C, H, W), jnp.float32)
    conv_w, conv_b, gamma, beta = make_params(C, k[1], k[2], k[3], k[4])
    out = jax.block_until_ready(frelu(x, conv_w, conv_b, gamma, beta))
    ref = frelu_reference(x, conv_w, conv_b, gamma, beta)
    np.testing.assert_allclose(np.asarray(out), np.asarray(ref),
                               rtol=1e-4, atol=1e-4)

    # --- Test 2: bf16 I/O (halved HBM traffic / VMEM; f32 compute in-kernel) ---
    x_bf = x.astype(jnp.bfloat16)
    out_bf = jax.block_until_ready(frelu(x_bf, conv_w, conv_b, gamma, beta))
    ref_bf = frelu_reference(x_bf.astype(jnp.float32), conv_w, conv_b, gamma, beta)
    np.testing.assert_allclose(np.asarray(out_bf.astype(jnp.float32)),
                               np.asarray(ref_bf), rtol=5e-2, atol=5e-2)

    # --- Test 3: N-tiled two-phase BN path (used when the batch slab would
    #     exceed the VMEM budget, e.g. v7x 64 MiB at real CNN sizes) ---
    k = jax.random.split(jax.random.PRNGKey(1), 5)
    N2, C2, H2, W2 = 4, 16, 16, 16
    x2 = jax.random.normal(k[0], (N2, C2, H2, W2), jnp.float32)
    conv_w2, conv_b2, gamma2, beta2 = make_params(C2, k[1], k[2], k[3], k[4])
    out2 = jax.block_until_ready(
        frelu(x2, conv_w2, conv_b2, gamma2, beta2,
              channels_per_block=8, batch_per_block=2, two_pass=True))
    ref2 = frelu_reference(x2, conv_w2, conv_b2, gamma2, beta2)
    np.testing.assert_allclose(np.asarray(out2), np.asarray(ref2),
                               rtol=1e-4, atol=1e-4)

    print("KERNEL_OK")
</pallas_src>

<mosaic_0001>
module attributes {stable_mosaic.version = 11 : i64} {
  func.func @kernel(%arg0: i32, %arg1: memref<2x4x256xf32, #tpu.memory_space<vmem>>, %arg2: memref<9x4x1xf32, #tpu.memory_space<vmem>>, %arg3: memref<4x1x256xf32, #tpu.memory_space<vmem>>, %arg4: memref<4x1xf32, #tpu.memory_space<vmem>>, %arg5: memref<4x1xf32, #tpu.memory_space<vmem>>, %arg6: memref<2x4x256xf32, #tpu.memory_space<vmem>>) attributes {dimension_semantics = [#tpu.dimension_semantics<parallel>], iteration_bounds = array<i64: 1>, scalar_prefetch = 0 : i64, scratch_operands = 0 : i64, tpu.core_type = #tpu.core_type<tc>, window_params = [{transform_indices = @transform_0, window_bounds = array<i64: 2, 4, 256>}, {transform_indices = @transform_1, window_bounds = array<i64: 9, 4, 1>}, {pipeline_mode = #tpu.pipeline_mode<synchronous>, transform_indices = @transform_2, window_bounds = array<i64: 4, 1, 256>}, {transform_indices = @transform_3, window_bounds = array<i64: 4, 1>}, {transform_indices = @transform_4, window_bounds = array<i64: 4, 1>}, {transform_indices = @transform_5, window_bounds = array<i64: 2, 4, 256>}]} {
    %c0 = arith.constant 0 : index
    %c0_0 = arith.constant 0 : index
    %c0_1 = arith.constant 0 : index
    %0 = vector.load %arg1[%c0, %c0_0, %c0_1] : memref<2x4x256xf32, #tpu.memory_space<vmem>>, vector<2x4x256xf32>
    %c0_2 = arith.constant 0 : index
    %c0_3 = arith.constant 0 : index
    %c0_4 = arith.constant 0 : index
    %1 = vector.load %arg3[%c0_2, %c0_3, %c0_4] : memref<4x1x256xf32, #tpu.memory_space<vmem>>, vector<4x1x256xf32>
    %2 = vector.extract_strided_slice %1 {offsets = [0, 0, 0], sizes = [1, 1, 256], strides = [1, 1, 1]} : vector<4x1x256xf32> to vector<1x1x256xf32>
    %3 = vector.extract_strided_slice %1 {offsets = [1, 0, 0], sizes = [1, 1, 256], strides = [1, 1, 1]} : vector<4x1x256xf32> to vector<1x1x256xf32>
    %4 = vector.extract_strided_slice %1 {offsets = [2, 0, 0], sizes = [1, 1, 256], strides = [1, 1, 1]} : vector<4x1x256xf32> to vector<1x1x256xf32>
    %5 = vector.extract_strided_slice %1 {offsets = [3, 0, 0], sizes = [1, 1, 256], strides = [1, 1, 1]} : vector<4x1x256xf32> to vector<1x1x256xf32>
    %c1_i32 = arith.constant 1 : i32
    %6 = tpu.dynamic_rotate %0 by %c1_i32 dim 2 : vector<2x4x256xf32>, i32 -> vector<2x4x256xf32>
    %7 = vector.broadcast %2 : vector<1x1x256xf32> to vector<2x4x256xf32>
    %8 = arith.mulf %6, %7 : vector<2x4x256xf32>
    %c255_i32 = arith.constant 255 : i32
    %9 = tpu.dynamic_rotate %0 by %c255_i32 dim 2 : vector<2x4x256xf32>, i32 -> vector<2x4x256xf32>
    %10 = vector.broadcast %3 : vector<1x1x256xf32> to vector<2x4x256xf32>
    %11 = arith.mulf %9, %10 : vector<2x4x256xf32>
    %c3 = arith.constant 3 : index
    %c0_5 = arith.constant 0 : index
    %c0_6 = arith.constant 0 : index
    %12 = vector.load %arg2[%c3, %c0_5, %c0_6] : memref<9x4x1xf32, #tpu.memory_space<vmem>>, vector<1x4x1xf32>
    %13 = vector.shape_cast %12 : vector<1x4x1xf32> to vector<4x1xf32>
    %14 = vector.shape_cast %13 : vector<4x1xf32> to vector<1x4x1xf32>
    %15 = vector.broadcast %14 : vector<1x4x1xf32> to vector<2x4x256xf32>
    %16 = arith.mulf %15, %8 : vector<2x4x256xf32>
    %c4 = arith.constant 4 : index
    %c0_7 = arith.constant 0 : index
    %c0_8 = arith.constant 0 : index
    %17 = vector.load %arg2[%c4, %c0_7, %c0_8] : memref<9x4x1xf32, #tpu.memory_space<vmem>>, vector<1x4x1xf32>
    %18 = vector.shape_cast %17 : vector<1x4x1xf32> to vector<4x1xf32>
    %19 = vector.shape_cast %18 : vector<4x1xf32> to vector<1x4x1xf32>
    %20 = vector.broadcast %19 : vector<1x4x1xf32> to vector<2x4x256xf32>
    %21 = arith.mulf %20, %0 : vector<2x4x256xf32>
    %22 = arith.addf %16, %21 : vector<2x4x256xf32>
    %c5 = arith.constant 5 : index
    %c0_9 = arith.constant 0 : index
    %c0_10 = arith.constant 0 : index
    %23 = vector.load %arg2[%c5, %c0_9, %c0_10] : memref<9x4x1xf32, #tpu.memory_space<vmem>>, vector<1x4x1xf32>
    %24 = vector.shape_cast %23 : vector<1x4x1xf32> to vector<4x1xf32>
    %25 = vector.shape_cast %24 : vector<4x1xf32> to vector<1x4x1xf32>
    %26 = vector.broadcast %25 : vector<1x4x1xf32> to vector<2x4x256xf32>
    %27 = arith.mulf %26, %11 : vector<2x4x256xf32>
    %28 = arith.addf %22, %27 : vector<2x4x256xf32>
    %c0_11 = arith.constant 0 : index
    %c0_12 = arith.constant 0 : index
    %c0_13 = arith.constant 0 : index
    %29 = vector.load %arg2[%c0_11, %c0_12, %c0_13] : memref<9x4x1xf32, #tpu.memory_space<vmem>>, vector<1x4x1xf32>
    %30 = vector.shape_cast %29 : vector<1x4x1xf32> to vector<4x1xf32>
    %31 = vector.shape_cast %30 : vector<4x1xf32> to vector<1x4x1xf32>
    %32 = vector.broadcast %31 : vector<1x4x1xf32> to vector<2x4x256xf32>
    %33 = arith.mulf %32, %8 : vector<2x4x256xf32>
    %c1 = arith.constant 1 : index
    %c0_14 = arith.constant 0 : index
    %c0_15 = arith.constant 0 : index
    %34 = vector.load %arg2[%c1, %c0_14, %c0_15] : memref<9x4x1xf32, #tpu.memory_space<vmem>>, vector<1x4x1xf32>
    %35 = vector.shape_cast %34 : vector<1x4x1xf32> to vector<4x1xf32>
    %36 = vector.shape_cast %35 : vector<4x1xf32> to vector<1x4x1xf32>
    %37 = vector.broadcast %36 : vector<1x4x1xf32> to vector<2x4x256xf32>
    %38 = arith.mulf %37, %0 : vector<2x4x256xf32>
    %39 = arith.addf %33, %38 : vector<2x4x256xf32>
    %c2 = arith.constant 2 : index
    %c0_16 = arith.constant 0 : index
    %c0_17 = arith.constant 0 : index
    %40 = vector.load %arg2[%c2, %c0_16, %c0_17] : memref<9x4x1xf32, #tpu.memory_space<vmem>>, vector<1x4x1xf32>
    %41 = vector.shape_cast %40 : vector<1x4x1xf32> to vector<4x1xf32>
    %42 = vector.shape_cast %41 : vector<4x1xf32> to vector<1x4x1xf32>
    %43 = vector.broadcast %42 : vector<1x4x1xf32> to vector<2x4x256xf32>
    %44 = arith.mulf %43, %11 : vector<2x4x256xf32>
    %45 = arith.addf %39, %44 : vector<2x4x256xf32>
    %c16_i32 = arith.constant 16 : i32
    %46 = tpu.dynamic_rotate %45 by %c16_i32 dim 2 : vector<2x4x256xf32>, i32 -> vector<2x4x256xf32>
    %47 = vector.broadcast %4 : vector<1x1x256xf32> to vector<2x4x256xf32>
    %48 = arith.mulf %46, %47 : vector<2x4x256xf32>
    %49 = arith.addf %28, %48 : vector<2x4x256xf32>
    %c6 = arith.constant 6 : index
    %c0_18 = arith.constant 0 : index
    %c0_19 = arith.constant 0 : index
    %50 = vector.load %arg2[%c6, %c0_18, %c0_19] : memref<9x4x1xf32, #tpu.memory_space<vmem>>, vector<1x4x1xf32>
    %51 = vector.shape_cast %50 : vector<1x4x1xf32> to vector<4x1xf32>
    %52 = vector.shape_cast %51 : vector<4x1xf32> to vector<1x4x1xf32>
    %53 = vector.broadcast %52 : vector<1x4x1xf32> to vector<2x4x256xf32>
    %54 = arith.mulf %53, %8 : vector<2x4x256xf32>
    %c7 = arith.constant 7 : index
    %c0_20 = arith.constant 0 : index
    %c0_21 = arith.constant 0 : index
    %55 = vector.load %arg2[%c7, %c0_20, %c0_21] : memref<9x4x1xf32, #tpu.memory_space<vmem>>, vector<1x4x1xf32>
    %56 = vector.shape_cast %55 : vector<1x4x1xf32> to vector<4x1xf32>
    %57 = vector.shape_cast %56 : vector<4x1xf32> to vector<1x4x1xf32>
    %58 = vector.broadcast %57 : vector<1x4x1xf32> to vector<2x4x256xf32>
    %59 = arith.mulf %58, %0 : vector<2x4x256xf32>
    %60 = arith.addf %54, %59 : vector<2x4x256xf32>
    %c8 = arith.constant 8 : index
    %c0_22 = arith.constant 0 : index
    %c0_23 = arith.constant 0 : index
    %61 = vector.load %arg2[%c8, %c0_22, %c0_23] : memref<9x4x1xf32, #tpu.memory_space<vmem>>, vector<1x4x1xf32>
    %62 = vector.shape_cast %61 : vector<1x4x1xf32> to vector<4x1xf32>
    %63 = vector.shape_cast %62 : vector<4x1xf32> to vector<1x4x1xf32>
    %64 = vector.broadcast %63 : vector<1x4x1xf32> to vector<2x4x256xf32>
    %65 = arith.mulf %64, %11 : vector<2x4x256xf32>
    %66 = arith.addf %60, %65 : vector<2x4x256xf32>
    %c240_i32 = arith.constant 240 : i32
    %67 = tpu.dynamic_rotate %66 by %c240_i32 dim 2 : vector<2x4x256xf32>, i32 -> vector<2x4x256xf32>
    %68 = vector.broadcast %5 : vector<1x1x256xf32> to vector<2x4x256xf32>
    %69 = arith.mulf %67, %68 : vector<2x4x256xf32>
    %70 = arith.addf %49, %69 : vector<2x4x256xf32>
    %cst = arith.constant dense<0.000000e+00> : vector<2x4xf32>
    %71 = vector.multi_reduction <add>, %70, %cst [2] : vector<2x4x256xf32> to vector<2x4xf32>
    %72 = vector.shape_cast %71 : vector<2x4xf32> to vector<2x4x1xf32>
    %cst_24 = arith.constant dense<0.000000e+00> : vector<4x1xf32>
    %73 = vector.multi_reduction <add>, %72, %cst_24 [0] : vector<2x4x1xf32> to vector<4x1xf32>
    %74 = vector.shape_cast %73 : vector<4x1xf32> to vector<1x4x1xf32>
    %75 = arith.mulf %70, %70 : vector<2x4x256xf32>
    %cst_25 = arith.constant dense<0.000000e+00> : vector<2x4xf32>
    %76 = vector.multi_reduction <add>, %75, %cst_25 [2] : vector<2x4x256xf32> to vector<2x4xf32>
    %77 = vector.shape_cast %76 : vector<2x4xf32> to vector<2x4x1xf32>
    %cst_26 = arith.constant dense<0.000000e+00> : vector<4x1xf32>
    %78 = vector.multi_reduction <add>, %77, %cst_26 [0] : vector<2x4x1xf32> to vector<4x1xf32>
    %79 = vector.shape_cast %78 : vector<4x1xf32> to vector<1x4x1xf32>
    %cst_27 = arith.constant 0.001953125 : f32
    %80 = vector.broadcast %cst_27 : f32 to vector<1x4x1xf32>
    %81 = arith.mulf %74, %80 : vector<1x4x1xf32>
    %cst_28 = arith.constant 0.001953125 : f32
    %82 = vector.broadcast %cst_28 : f32 to vector<1x4x1xf32>
    %83 = arith.mulf %79, %82 : vector<1x4x1xf32>
    %84 = arith.mulf %81, %81 : vector<1x4x1xf32>
    %85 = arith.subf %83, %84 : vector<1x4x1xf32>
    %cst_29 = arith.constant 0.000000e+00 : f32
    %86 = vector.broadcast %cst_29 : f32 to vector<1x4x1xf32>
    %87 = arith.maximumf %85, %86 : vector<1x4x1xf32>
    %c0_30 = arith.constant 0 : index
    %c0_31 = arith.constant 0 : index
    %88 = vector.load %arg4[%c0_30, %c0_31] : memref<4x1xf32, #tpu.memory_space<vmem>>, vector<4x1xf32>
    %89 = vector.shape_cast %88 : vector<4x1xf32> to vector<1x4x1xf32>
    %cst_32 = arith.constant 9.99999974E-6 : f32
    %90 = vector.broadcast %cst_32 : f32 to vector<1x4x1xf32>
    %91 = arith.addf %87, %90 : vector<1x4x1xf32>
    %92 = math.rsqrt %91 : vector<1x4x1xf32>
    %93 = arith.mulf %89, %92 : vector<1x4x1xf32>
    %c0_33 = arith.constant 0 : index
    %c0_34 = arith.constant 0 : index
    %94 = vector.load %arg5[%c0_33, %c0_34] : memref<4x1xf32, #tpu.memory_space<vmem>>, vector<4x1xf32>
    %95 = vector.shape_cast %94 : vector<4x1xf32> to vector<1x4x1xf32>
    %96 = arith.mulf %81, %93 : vector<1x4x1xf32>
    %97 = arith.subf %95, %96 : vector<1x4x1xf32>
    %98 = vector.broadcast %93 : vector<1x4x1xf32> to vector<2x4x256xf32>
    %99 = arith.mulf %70, %98 : vector<2x4x256xf32>
    %100 = vector.broadcast %97 : vector<1x4x1xf32> to vector<2x4x256xf32>
    %101 = arith.addf %99, %100 : vector<2x4x256xf32>
    %c0_35 = arith.constant 0 : index
    %c0_36 = arith.constant 0 : index
    %c0_37 = arith.constant 0 : index
    %102 = vector.load %arg1[%c0_35, %c0_36, %c0_37] : memref<2x4x256xf32, #tpu.memory_space<vmem>>, vector<2x4x256xf32>
    %103 = arith.maximumf %102, %101 : vector<2x4x256xf32>
    %c0_38 = arith.constant 0 : index
    %c0_39 = arith.constant 0 : index
    %c0_40 = arith.constant 0 : index
    %104 = vector.load %arg6[%c0_38, %c0_39, %c0_40] : memref<2x4x256xf32, #tpu.memory_space<vmem>>, vector<2x4x256xf32>
    tpu.vector_store %arg6[%c0_38, %c0_39, %c0_40], %103 {strides = array<i32>} : memref<2x4x256xf32, #tpu.memory_space<vmem>>, vector<2x4x256xf32>,
    return
  }
  func.func @transform_0(%arg0: i32) -> (i32, i32, i32) {
    %c0_i32 = arith.constant 0 : i32
    %c0_i32_0 = arith.constant 0 : i32
    %c0_i32_1 = arith.constant 0 : i32
    return %c0_i32, %arg0, %c0_i32_0 : i32, i32, i32
  }
  func.func @transform_1(%arg0: i32) -> (i32, i32, i32) {
    %c0_i32 = arith.constant 0 : i32
    %c0_i32_0 = arith.constant 0 : i32
    %c0_i32_1 = arith.constant 0 : i32
    return %c0_i32, %arg0, %c0_i32_0 : i32, i32, i32
  }
  func.func @transform_2(%arg0: i32) -> (i32, i32, i32) {
    %c0_i32 = arith.constant 0 : i32
    %c0_i32_0 = arith.constant 0 : i32
    %c0_i32_1 = arith.constant 0 : i32
    %c0_i32_2 = arith.constant 0 : i32
    return %c0_i32, %c0_i32_0, %c0_i32_1 : i32, i32, i32
  }
  func.func @transform_3(%arg0: i32) -> (i32, i32) {
    %c0_i32 = arith.constant 0 : i32
    %c0_i32_0 = arith.constant 0 : i32
    return %arg0, %c0_i32 : i32, i32
  }
  func.func @transform_4(%arg0: i32) -> (i32, i32) {
    %c0_i32 = arith.constant 0 : i32
    %c0_i32_0 = arith.constant 0 : i32
    return %arg0, %c0_i32 : i32, i32
  }
  func.func @transform_5(%arg0: i32) -> (i32, i32, i32) {
    %c0_i32 = arith.constant 0 : i32
    %c0_i32_0 = arith.constant 0 : i32
    %c0_i32_1 = arith.constant 0 : i32
    return %c0_i32, %arg0, %c0_i32_0 : i32, i32, i32
  }
}

</mosaic_0001>

<llo_original>
// kernel: tpu_custom_call.1
$region0: #{tpu_custom_call.1}
  #allocation0 [shape = 'u32[]', space=smem, size = 0x4, offset = 0x4, fixed_abs, tag = 'smem constant byte address 0x4 - core index']
  #allocation1 [shape = 'u32[144,128]{1,0:T(1,128)}', space=vmem, size = 0x12000, scoped, tag = 'internal scratch']
  %s0 = inlined_call_operand.vmem [shape: f32[2,4,256], index: 0, kind: input, shape index: {}]
  %s1 = inlined_call_operand.vmem [shape: f32[9,4,1], index: 1, kind: input, shape index: {}]
  %s2 = inlined_call_operand.vmem [shape: f32[4,1,256], index: 2, kind: input, shape index: {}]
  %s3 = inlined_call_operand.vmem [shape: f32[4,1], index: 3, kind: input, shape index: {}]
  %s4 = inlined_call_operand.vmem [shape: f32[4,1], index: 4, kind: input, shape index: {}]
  %s5 = inlined_call_operand.hbm [shape: f32[2,4,256], index: 5, kind: output, shape index: {}]
  %s6 = sld [smem:[#allocation0]]
  $region30: #{tpu_custom_call.1} parent=0
    _
  %s8 = ssub.s32 1, %s6
  %s9 = scalar_select 0, %s8, %s6
  $region1: #{tpu_custom_call.1} parent=0
    #allocation2 [shape = 'u8[8192]{0}', space=vmem, size = 0x2000, scoped, tag = 'output window, operand 0, single buffered']
    #allocation3 [shape = 's32[1]{0}', space=sflag, size = 0x4, scoped, tag = 'scoped memory for tpu_custom_call.1']
    %10 = vsyncpa [#allocation3], 0
    // Predicated region
    $region2: #{tpu_custom_call.1} parent=1 // pred_check
      _
    $region3: #{tpu_custom_call.1} parent=1 // pred_check_branch
      %12 = sbr.rel (0) target = $region5
    $region4: #{tpu_custom_call.1} parent=1 // pred_region
      _
    $region5: #{tpu_custom_call.1} parent=1 // pred_fallthru
      _
    // Predicated region
    $region6: #{tpu_custom_call.1} parent=1 // pred_check
      _
    $region7: #{tpu_custom_call.1} parent=1 // pred_check_branch
      %14 = sbr.rel (0) target = $region9
    $region8: #{tpu_custom_call.1} parent=1 // pred_region
      _
    $region9: #{tpu_custom_call.1} parent=1 // pred_fallthru
      _
    // Predicated region
    $region10: #{tpu_custom_call.1} parent=1 // pred_check
      _
    $region11: #{tpu_custom_call.1} parent=1 // pred_check_branch
      %16 = sbr.rel (0) target = $region13
    $region12: #{tpu_custom_call.1} parent=1 // pred_region
      _
    $region13: #{tpu_custom_call.1} parent=1 // pred_fallthru
      _
    // Predicated region
    $region14: #{tpu_custom_call.1} parent=1 // pred_check
      _
    $region15: #{tpu_custom_call.1} parent=1 // pred_check_branch
      %18 = sbr.rel (0) target = $region17
    $region16: #{tpu_custom_call.1} parent=1 // pred_region
      _
    $region17: #{tpu_custom_call.1} parent=1 // pred_fallthru
      _
    // Predicated region
    $region18: #{tpu_custom_call.1} parent=1 // pred_check
      _
    $region19: #{tpu_custom_call.1} parent=1 // pred_check_branch
      %20 = sbr.rel (0) target = $region21
    $region20: #{tpu_custom_call.1} parent=1 // pred_region
      _
    $region21: #{tpu_custom_call.1} parent=1 // pred_fallthru
      _
    %v21 = vld [vmem:[%s0] sm:$0xff]
    %v22 = vld [vmem:[%s0 + $0x8] sm:$0xff]
    %v23 = vld [vmem:[%s2] sm:$0x3]
    %v24 = vld [vmem:[%s2 + $0x2] sm:$0x3]
    %v25 = vld [vmem:[%s2 + $0x4] sm:$0x3]
    %v26 = vld [vmem:[%s2 + $0x6] sm:$0x3]
    %v29 = vcombine.high %v21, %v21
    %v30 = vcombine.high %v22, %v22
    %33 = vrot.lane.b32.xlu0 %v21, 1
    %v34 = vpop.permute.xlu0 %33
    %35 = vrot.lane.b32.xlu0 %v22, 1
    %v36 = vpop.permute.xlu0 %35
    %37 = vrot.lane.b32.xlu0 %v29, 1
    %v38 = vpop.permute.xlu0 %37
    %39 = vrot.lane.b32.xlu0 %v30, 1
    %v40 = vpop.permute.xlu0 %39
    %v41 = vlaneseq
    %v42 = vand.u32 %v41, 127
    %vm43 = vcmp.lt.s32.totalorder %v42, 1
    %v44 = vsel %vm43, %v34, %v38
    %v45 = vsel %vm43, %v36, %v40
    %v46 = vsel %vm43, %v38, %v34
    %v47 = vsel %vm43, %v40, %v36
    %v49 = vlaneseq
    %v50 = vshrl.u32 %v49, 7
    %v51 = vsub.s32 0, %v50
    %v52 = vrot.slane %v23, %v51
    %v53 = vlaneseq
    %v54 = vshrl.u32 %v53, 7
    %v55 = vsub.s32 1, %v54
    %v56 = vrot.slane %v23, %v55
    %v59 = vmul.f32 %v46, %v52
    %v60 = vmul.f32 %v44, %v56
    %v61 = vmul.f32 %v47, %v52
    %v62 = vmul.f32 %v45, %v56
    %63 = vrot.lane.b32.xlu0 %v21, 127
    %v64 = vpop.permute.xlu0 %63
    %65 = vrot.lane.b32.xlu0 %v22, 127
    %v66 = vpop.permute.xlu0 %65
    %67 = vrot.lane.b32.xlu0 %v29, 127
    %v68 = vpop.permute.xlu0 %67
    %69 = vrot.lane.b32.xlu0 %v30, 127
    %v70 = vpop.permute.xlu0 %69
    %vm71 = vcmp.lt.s32.totalorder %v42, 127
    %v72 = vsel %vm71, %v64, %v68
    %v73 = vsel %vm71, %v66, %v70
    %v74 = vsel %vm71, %v68, %v64
    %v75 = vsel %vm71, %v70, %v66
    %v77 = vlaneseq
    %v78 = vshrl.u32 %v77, 7
    %v79 = vsub.s32 0, %v78
    %v80 = vrot.slane %v24, %v79
    %v81 = vlaneseq
    %v82 = vshrl.u32 %v81, 7
    %v83 = vsub.s32 1, %v82
    %v84 = vrot.slane %v24, %v83
    %v87 = vmul.f32 %v72, %v80
    %v88 = vmul.f32 %v74, %v84
    %v89 = vmul.f32 %v73, %v80
    %v90 = vmul.f32 %v75, %v84
    %s91 = scalar_lea.vmem %s1, 12
    %v92 = vld [vmem:[%s91] sm:$0xf]
    %94 = vset.pattern.permute.xlu0 0
    %95 = vperm.xlu0 %94, %v92
    %v96 = vpop.permute.xlu0 %95
    %v98 = vmul.f32 %v96, %v59
    %v99 = vmul.f32 %v96, %v60
    %v100 = vmul.f32 %v96, %v61
    %v101 = vmul.f32 %v96, %v62
    %s102 = scalar_lea.vmem %s1, 16
    %v103 = vld [vmem:[%s102] sm:$0xf]
    %105 = vset.pattern.permute.xlu0 0
    %106 = vperm.xlu0 %105, %v103
    %v107 = vpop.permute.xlu0 %106
    %v109 = vmul.f32 %v107, %v21
    %v110 = vmul.f32 %v107, %v29
    %v111 = vmul.f32 %v107, %v22
    %v112 = vmul.f32 %v107, %v30
    %v113 = vadd.f32 %v98, %v109
    %v114 = vadd.f32 %v99, %v110
    %v115 = vadd.f32 %v100, %v111
    %v116 = vadd.f32 %v101, %v112
    %s117 = scalar_lea.vmem %s1, 20
    %v118 = vld [vmem:[%s117] sm:$0xf]
    %120 = vset.pattern.permute.xlu0 0
    %121 = vperm.xlu0 %120, %v118
    %v122 = vpop.permute.xlu0 %121
    %v124 = vmul.f32 %v122, %v87
    %v125 = vmul.f32 %v122, %v88
    %v126 = vmul.f32 %v122, %v89
    %v127 = vmul.f32 %v122, %v90
    %v128 = vadd.f32 %v113, %v124
    %v129 = vadd.f32 %v114, %v125
    %v130 = vadd.f32 %v115, %v126
    %v131 = vadd.f32 %v116, %v127
    %v132 = vld [vmem:[%s1] sm:$0xf]
    %134 = vset.pattern.permute.xlu0 0
    %135 = vperm.xlu0 %134, %v132
    %v136 = vpop.permute.xlu0 %135
    %v138 = vmul.f32 %v136, %v59
    %v139 = vmul.f32 %v136, %v60
    %v140 = vmul.f32 %v136, %v61
    %v141 = vmul.f32 %v136, %v62
    %s142 = scalar_lea.vmem %s1, 4
    %v143 = vld [vmem:[%s142] sm:$0xf]
    %145 = vset.pattern.permute.xlu0 0
    %146 = vperm.xlu0 %145, %v143
    %v147 = vpop.permute.xlu0 %146
    %v149 = vmul.f32 %v147, %v21
    %v150 = vmul.f32 %v147, %v29
    %v151 = vmul.f32 %v147, %v22
    %v152 = vmul.f32 %v147, %v30
    %v153 = vadd.f32 %v138, %v149
    %v154 = vadd.f32 %v139, %v150
    %v155 = vadd.f32 %v140, %v151
    %v156 = vadd.f32 %v141, %v152
    %s157 = scalar_lea.vmem %s1, 8
    %v158 = vld [vmem:[%s157] sm:$0xf]
    %160 = vset.pattern.permute.xlu0 0
    %161 = vperm.xlu0 %160, %v158
    %v162 = vpop.permute.xlu0 %161
    %v164 = vmul.f32 %v162, %v87
    %v165 = vmul.f32 %v162, %v88
    %v166 = vmul.f32 %v162, %v89
    %v167 = vmul.f32 %v162, %v90
    %v168 = vadd.f32 %v153, %v164
    %v169 = vadd.f32 %v154, %v165
    %v170 = vadd.f32 %v155, %v166
    %v171 = vadd.f32 %v156, %v167
    %172 = vrot.lane.b32.xlu0 %v168, 16
    %v173 = vpop.permute.xlu0 %172
    %174 = vrot.lane.b32.xlu0 %v170, 16
    %v175 = vpop.permute.xlu0 %174
    %176 = vrot.lane.b32.xlu0 %v169, 16
    %v177 = vpop.permute.xlu0 %176
    %178 = vrot.lane.b32.xlu0 %v171, 16
    %v179 = vpop.permute.xlu0 %178
    %vm180 = vcmp.lt.s32.totalorder %v42, 16
    %v181 = vsel %vm180, %v173, %v177
    %v182 = vsel %vm180, %v175, %v179
    %v183 = vsel %vm180, %v177, %v173
    %v184 = vsel %vm180, %v179, %v175
    %v186 = vlaneseq
    %v187 = vshrl.u32 %v186, 7
    %v188 = vsub.s32 0, %v187
    %v189 = vrot.slane %v25, %v188
    %v190 = vlaneseq
    %v191 = vshrl.u32 %v190, 7
    %v192 = vsub.s32 1, %v191
    %v193 = vrot.slane %v25, %v192
    %v196 = vmul.f32 %v183, %v189
    %v197 = vmul.f32 %v181, %v193
    %v198 = vmul.f32 %v184, %v189
    %v199 = vmul.f32 %v182, %v193
    %v200 = vadd.f32 %v128, %v196
    %v201 = vadd.f32 %v129, %v197
    %v202 = vadd.f32 %v130, %v198
    %v203 = vadd.f32 %v131, %v199
    %s204 = scalar_lea.vmem %s1, 24
    %v205 = vld [vmem:[%s204] sm:$0xf]
    %207 = vset.pattern.permute.xlu0 0
    %208 = vperm.xlu0 %207, %v205
    %v209 = vpop.permute.xlu0 %208
    %v211 = vmul.f32 %v209, %v59
    %v212 = vmul.f32 %v209, %v60
    %v213 = vmul.f32 %v209, %v61
    %v214 = vmul.f32 %v209, %v62
    %s215 = scalar_lea.vmem %s1, 28
    %v216 = vld [vmem:[%s215] sm:$0xf]
    %218 = vset.pattern.permute.xlu0 0
    %219 = vperm.xlu0 %218, %v216
    %v220 = vpop.permute.xlu0 %219
    %v222 = vmul.f32 %v220, %v21
    %v223 = vmul.f32 %v220, %v29
    %v224 = vmul.f32 %v220, %v22
    %v225 = vmul.f32 %v220, %v30
    %v226 = vadd.f32 %v211, %v222
    %v227 = vadd.f32 %v212, %v223
    %v228 = vadd.f32 %v213, %v224
    %v229 = vadd.f32 %v214, %v225
    %s230 = scalar_lea.vmem %s1, 32
    %v231 = vld [vmem:[%s230] sm:$0xf]
    %233 = vset.pattern.permute.xlu0 0
    %234 = vperm.xlu0 %233, %v231
    %v235 = vpop.permute.xlu0 %234
    %v237 = vmul.f32 %v235, %v87
    %v238 = vmul.f32 %v235, %v88
    %v239 = vmul.f32 %v235, %v89
    %v240 = vmul.f32 %v235, %v90
    %v241 = vadd.f32 %v226, %v237
    %v242 = vadd.f32 %v227, %v238
    %v243 = vadd.f32 %v228, %v239
    %v244 = vadd.f32 %v229, %v240
    %245 = vrot.lane.b32.xlu0 %v241, 112
    %v246 = vpop.permute.xlu0 %245
    %247 = vrot.lane.b32.xlu0 %v243, 112
    %v248 = vpop.permute.xlu0 %247
    %249 = vrot.lane.b32.xlu0 %v242, 112
    %v250 = vpop.permute.xlu0 %249
    %251 = vrot.lane.b32.xlu0 %v244, 112
    %v252 = vpop.permute.xlu0 %251
    %vm253 = vcmp.lt.s32.totalorder %v42, 112
    %v254 = vsel %vm253, %v246, %v250
    %v255 = vsel %vm253, %v248, %v252
    %v256 = vsel %vm253, %v250, %v246
    %v257 = vsel %vm253, %v252, %v248
    %v259 = vlaneseq
    %v260 = vshrl.u32 %v259, 7
    %v261 = vsub.s32 0, %v260
    %v262 = vrot.slane %v26, %v261
    %v263 = vlaneseq
    %v264 = vshrl.u32 %v263, 7
    %v265 = vsub.s32 1, %v264
    %v266 = vrot.slane %v26, %v265
    %v269 = vmul.f32 %v254, %v262
    %v270 = vmul.f32 %v256, %v266
    %v271 = vmul.f32 %v255, %v262
    %v272 = vmul.f32 %v257, %v266
    %v273 = vadd.f32 %v200, %v269
    %v274 = vadd.f32 %v201, %v270
    %v275 = vadd.f32 %v202, %v271
    %v276 = vadd.f32 %v203, %v272
    %vm277 = vcmask 1043456
    %v278 = vsel %vm277, %v273, 0.0
    %v279 = vsel %vm277, %v274, 0.0
    %v280 = vadd.f32 %v278, %v279
    %281 = vadd.xlane.f32.xlu0 %v280
    %v282 = vpop.xlane.xlu0 %281
    %v283 = vsel %vm277, %v275, 0.0
    %v284 = vsel %vm277, %v276, 0.0
    %v285 = vadd.f32 %v283, %v284
    %286 = vadd.xlane.f32.xlu0 %v285
    %v287 = vpop.xlane.xlu0 %286
    %v288 = vsel %vm277, %v282, 0.0
    %v289 = vsel %vm277, %v287, 0.0
    %v290 = vadd.f32 %v288, %v289
    %v291 = vmul.f32 %v273, %v273
    %v292 = vmul.f32 %v274, %v274
    %v293 = vmul.f32 %v275, %v275
    %v294 = vmul.f32 %v276, %v276
    %v295 = vsel %vm277, %v291, 0.0
    %v296 = vsel %vm277, %v292, 0.0
    %v297 = vadd.f32 %v295, %v296
    %298 = vadd.xlane.f32.xlu0 %v297
    %v299 = vpop.xlane.xlu0 %298
    %v300 = vsel %vm277, %v293, 0.0
    %v301 = vsel %vm277, %v294, 0.0
    %v302 = vadd.f32 %v300, %v301
    %303 = vadd.xlane.f32.xlu0 %v302
    %v304 = vpop.xlane.xlu0 %303
    %v305 = vsel %vm277, %v299, 0.0
    %v306 = vsel %vm277, %v304, 0.0
    %v307 = vadd.f32 %v305, %v306
    %v308 = vmul.f32 %v290, 0.001953125
    %v309 = vmul.f32 %v307, 0.001953125
    %v310 = vmul.f32 %v308, %v308
    %v311 = vsub.f32 %v309, %v310
    %v312 = vmax.f32 %v311, 0.0
    %v313 = vld [vmem:[%s3] sm:$0xf]
    %v314 = vadd.f32 %v312, 1e-05
    %v315 = vrsqrt.pop %v314
    %v316 = vmul.f32 %v313, %v315
    %v317 = vld [vmem:[%s4] sm:$0xf]
    %v318 = vmul.f32 %v308, %v316
    %v319 = vsub.f32 %v317, %v318
    %321 = vset.pattern.permute.xlu0 0
    %322 = vperm.xlu0 %321, %v316
    %v323 = vpop.permute.xlu0 %322
    %v325 = vmul.f32 %v273, %v323
    %v326 = vmul.f32 %v274, %v323
    %v327 = vmul.f32 %v275, %v323
    %v328 = vmul.f32 %v276, %v323
    %330 = vset.pattern.permute.xlu0 0
    %331 = vperm.xlu0 %330, %v319
    %v332 = vpop.permute.xlu0 %331
    %v334 = vadd.f32 %v325, %v332
    %v335 = vadd.f32 %v326, %v332
    %v336 = vadd.f32 %v327, %v332
    %v337 = vadd.f32 %v328, %v332
    %v342 = vcombine.low %v334, %v335
    %v343 = vcombine.low %v336, %v337
    %v346 = vmax.f32 %v21, %v342
    %v347 = vmax.f32 %v22, %v343
    %348 = vst [vmem:[#allocation2] sm:$0xff] %v346
    %349 = vst [vmem:[#allocation2 + $0x8] sm:$0xff] %v347
    // Predicated region
    $region22: #{tpu_custom_call.1} parent=1 // pred_check
      _
    $region23: #{tpu_custom_call.1} parent=1 // pred_check_branch
      %351 = sbr.rel (0) target = $region25
    $region24: #{tpu_custom_call.1} parent=1 // pred_region
      %s353 = ssub.s32 256, 256
      %354 = vsyncadd [#allocation3], %s353
      %s355 = sshll.u32 [#allocation2], 4
      %s356 = int_to_ptr.vmem [resolvable:$true] %s355
      %361 = dma.vmem_to_hbm [thread:$0]  %s356, 256, %s5, [#allocation3], 128, 128, 8
    $region25: #{tpu_custom_call.1} parent=1 // pred_fallthru
      _
    // Predicated region
    $region26: #{tpu_custom_call.1} parent=1 // pred_check
      _
    $region27: #{tpu_custom_call.1} parent=1 // pred_check_branch
      %363 = sbr.rel (0) target = $region29
    $region28: #{tpu_custom_call.1} parent=1 // pred_region
      %364 = dma.done [#allocation3], 256
    $region29: #{tpu_custom_call.1} parent=1 // pred_fallthru
      _
    %365 = vsyncpa [#allocation3], 1

</llo_original>
